<compile_context>
chip_gen: v5e
topology: v5e:2x2
jax: 0.10.0
libtpu: 0.0.40
codegen_flags: <defaults>
</compile_context>

<pallas_src>
import functools

import jax
import jax.numpy as jnp
from jax import lax
from jax.experimental import pallas as pl
from jax.experimental.pallas import tpu as pltpu


def autopad(k, p=None):
    # same as the PyTorch helper used by Conv
    if p is None:
        p = k // 2 if isinstance(k, int) else [x // 2 for x in k]
    return p


def _round_up(x, m):
    return (x + m - 1) // m * m


def _gemm_bn_silu_kernel(lhs_ref, rhs_ref, shift_ref, o_ref, *, use_silu):
    # lhs_ref:   (1, TM, Kc)   im2col activation tile (bf16)
    # rhs_ref:   (Kc, C2p)     conv weight with BN scale folded in (bf16)
    # shift_ref: (1, C2p)      folded BN shift (f32)
    # o_ref:     (1, TM, C2p)  output tile (f32), lane-dense (C2p % 128 == 0)
    acc = jnp.dot(lhs_ref[0], rhs_ref[...],
                  preferred_element_type=jnp.float32)        # single MXU GEMM
    y = acc + shift_ref[...]                                  # BatchNorm shift
    if use_silu:
        y = y * jax.nn.sigmoid(y)                             # SiLU (f32)
    o_ref[0] = y.astype(o_ref.dtype)


def conv_bn_silu(x_nchw, weight, gamma, beta, running_mean, running_var,
                 *, k=1, s=1, p=None, g=1, eps=1e-5, act=True,
                 mxu_dtype=jnp.bfloat16, tile_m=256):
    """Fused Conv2d(bias=False) + BatchNorm2d(eval) + SiLU.  groups=1 only."""
    if g != 1:
        raise NotImplementedError("Conv with groups != 1 is not supported")
    p = autopad(k, p)
    N, C1, H, W = x_nchw.shape
    C2 = weight.shape[0]
    Ho = (H + 2 * p - k) // s + 1
    Wo = (W + 2 * p - k) // s + 1
    M = Ho * Wo                       # output pixels per image
    Kc = k * k * C1                   # im2col contraction depth

    LANE = 128
    C2p = _round_up(C2, LANE)         # lane-dense output channels
    TM = min(tile_m, _round_up(M, 8))  # spatial tile (bounds VMEM use)
    Mp = _round_up(M, TM)

    # ---- wrapper-side im2col (layout plumbing, no conv FLOPs here) ----
    x_nhwc = jnp.transpose(x_nchw, (0, 2, 3, 1))
    x_pad = jnp.pad(x_nhwc, ((0, 0), (p, p), (p, p), (0, 0)))
    taps = []
    for kh in range(k):
        for kw in range(k):
            taps.append(x_pad[:, kh:kh + (Ho - 1) * s + 1:s,
                              kw:kw + (Wo - 1) * s + 1:s, :])
    # feature order (kh, kw, c1) matches the weight flattening below
    lhs = jnp.concatenate(taps, axis=-1).reshape(N, M, Kc)
    if Mp != M:
        lhs = jnp.pad(lhs, ((0, 0), (0, Mp - M), (0, 0)))
    lhs = lhs.astype(mxu_dtype)

    # ---- fold BatchNorm (inference / running-stats) into weight & shift ----
    inv_std = 1.0 / jnp.sqrt(running_var.astype(jnp.float32) + eps)
    scale = gamma.astype(jnp.float32) * inv_std                       # (C2,)
    shift = beta.astype(jnp.float32) - running_mean.astype(jnp.float32) * scale
    # PyTorch (C2, C1, k, k) -> (k, k, C1, C2) -> (Kc, C2); scale folded in
    w = jnp.transpose(weight.astype(jnp.float32), (2, 3, 1, 0)).reshape(Kc, C2)
    w = w * scale[None, :]
    rhs = jnp.pad(w, ((0, 0), (0, C2p - C2))).astype(mxu_dtype)
    shift_p = jnp.pad(shift.reshape(1, C2), ((0, 0), (0, C2p - C2)))

    kernel = functools.partial(_gemm_bn_silu_kernel, use_silu=bool(act))

    out = pl.pallas_call(
        kernel,
        out_shape=jax.ShapeDtypeStruct((N, Mp, C2p), jnp.float32),
        grid_spec=pltpu.PrefetchScalarGridSpec(
            num_scalar_prefetch=0,
            grid=(N, Mp // TM),
            in_specs=[
                pl.BlockSpec((1, TM, Kc), lambda n, m: (n, m, 0)),
                pl.BlockSpec((Kc, C2p), lambda n, m: (0, 0)),
                pl.BlockSpec((1, C2p), lambda n, m: (0, 0)),
            ],
            out_specs=pl.BlockSpec((1, TM, C2p), lambda n, m: (n, m, 0)),
        ),
        compiler_params=pltpu.CompilerParams(
            dimension_semantics=("parallel", "parallel")),
    )(lhs, rhs, shift_p)

    # strip channel/row padding, back to PyTorch NCHW
    out = out[:, :M, :C2].reshape(N, Ho, Wo, C2)
    return jnp.transpose(out, (0, 3, 1, 2))


# ---------------------------- references -----------------------------------

def _reference_f32(x, weight, gamma, beta, mean, var, *, k, s, p=None,
                   eps=1e-5, act=True):
    """Exact f32 semantics of the PyTorch module (conv + BN(eval) + SiLU)."""
    p = autopad(k, p)
    y = lax.conv_general_dilated(
        x.astype(jnp.float32), weight.astype(jnp.float32),
        window_strides=(s, s), padding=[(p, p), (p, p)],
        dimension_numbers=("NCHW", "OIHW", "NCHW"))
    scale = (gamma / jnp.sqrt(var + eps)).reshape(1, -1, 1, 1)
    shift = (beta - mean * gamma / jnp.sqrt(var + eps)).reshape(1, -1, 1, 1)
    y = y * scale + shift
    return y * jax.nn.sigmoid(y) if act else y


def _reference_matched(x, weight, gamma, beta, mean, var, *, k, s, p=None,
                       eps=1e-5, act=True, mxu_dtype=jnp.bfloat16):
    """Same bf16-input / f32-accumulate arithmetic as the Pallas kernel."""
    p = autopad(k, p)
    inv_std = 1.0 / jnp.sqrt(var.astype(jnp.float32) + eps)
    scale = gamma.astype(jnp.float32) * inv_std
    shift = (beta.astype(jnp.float32)
             - mean.astype(jnp.float32) * scale).reshape(1, -1, 1, 1)
    w = weight.astype(jnp.float32) * scale.reshape(-1, 1, 1, 1)
    y = lax.conv_general_dilated(
        x.astype(mxu_dtype), w.astype(mxu_dtype),
        window_strides=(s, s), padding=[(p, p), (p, p)],
        dimension_numbers=("NCHW", "OIHW", "NCHW"),
        preferred_element_type=jnp.float32)
    y = y + shift
    return y * jax.nn.sigmoid(y) if act else y


if __name__ == "__main__":
    # module config: Conv(c1=4, c2=8, k=3, s=1)  (p = autopad(3) = 1, g=1, act=True)
    N, C1, C2, H, W, K, S = 2, 4, 8, 16, 16, 3, 1

    key = jax.random.PRNGKey(0)
    k_w, k_g, k_b, k_m, k_v, k_x = jax.random.split(key, 6)

    weight = 0.1 * jax.random.normal(k_w, (C2, C1, K, K), jnp.float32)
    gamma = 1.0 + 0.1 * jax.random.normal(k_g, (C2,), jnp.float32)
    beta = 0.05 * jax.random.normal(k_b, (C2,), jnp.float32)
    running_mean = 0.1 * jax.random.normal(k_m, (C2,), jnp.float32)
    running_var = 0.5 + jnp.abs(jax.random.normal(k_v, (C2,), jnp.float32))

    x = jax.random.normal(k_x, (N, C1, H, W), jnp.float32)

    out = conv_bn_silu(x, weight, gamma, beta, running_mean, running_var,
                       k=K, s=S)
    out = jax.block_until_ready(out)
    assert out.shape == (N, C2, H, W)

    # tight check against a reference using identical bf16/f32 arithmetic
    ref_m = _reference_matched(x, weight, gamma, beta, running_mean,
                               running_var, k=K, s=S)
    assert jnp.allclose(out, ref_m, atol=1e-3, rtol=1e-3)

    # loose check against the full-f32 PyTorch-semantics reference
    # (bf16 MXU inputs -> ~1e-2 worst-case absolute deviation)
    ref_f = _reference_f32(x, weight, gamma, beta, running_mean,
                           running_var, k=K, s=S)
    assert jnp.allclose(out, ref_f, atol=2e-2, rtol=2e-2)

    print("KERNEL_OK")
</pallas_src>

<mosaic_0001>
module attributes {stable_mosaic.version = 11 : i64} {
  func.func @_gemm_bn_silu_kernel(%arg0: i32, %arg1: i32, %arg2: memref<1x256x36xbf16, #tpu.memory_space<vmem>>, %arg3: memref<36x128xbf16, #tpu.memory_space<vmem>>, %arg4: memref<1x128xf32, #tpu.memory_space<vmem>>, %arg5: memref<1x256x128xf32, #tpu.memory_space<vmem>>) attributes {dimension_semantics = [#tpu.dimension_semantics<parallel>, #tpu.dimension_semantics<parallel>], iteration_bounds = array<i64: 2, 1>, scalar_prefetch = 0 : i64, scratch_operands = 0 : i64, tpu.core_type = #tpu.core_type<tc>, window_params = [{transform_indices = @transform_0, window_bounds = array<i64: 1, 256, 36>}, {pipeline_mode = #tpu.pipeline_mode<synchronous>, transform_indices = @transform_1, window_bounds = array<i64: 36, 128>}, {pipeline_mode = #tpu.pipeline_mode<synchronous>, transform_indices = @transform_2, window_bounds = array<i64: 1, 128>}, {transform_indices = @transform_3, window_bounds = array<i64: 1, 256, 128>}]} {
    %c0 = arith.constant 0 : index
    %c0_0 = arith.constant 0 : index
    %c0_1 = arith.constant 0 : index
    %0 = vector.load %arg2[%c0, %c0_0, %c0_1] : memref<1x256x36xbf16, #tpu.memory_space<vmem>>, vector<1x256x36xbf16>
    %1 = vector.shape_cast %0 : vector<1x256x36xbf16> to vector<256x36xbf16>
    %c0_2 = arith.constant 0 : index
    %c0_3 = arith.constant 0 : index
    %2 = vector.load %arg3[%c0_2, %c0_3] : memref<36x128xbf16, #tpu.memory_space<vmem>>, vector<36x128xbf16>
    %cst = arith.constant dense<0.000000e+00> : vector<256x128xf32>
    %3 = tpu.matmul %1, %2, %cst {dimension_numbers = #tpu.dot_dimension_numbers<[1], [0], [0], [1], [0, 0, 1, 1], [], []>} : vector<256x36xbf16>, vector<36x128xbf16>, vector<256x128xf32> -> vector<256x128xf32>
    %c0_4 = arith.constant 0 : index
    %c0_5 = arith.constant 0 : index
    %4 = vector.load %arg4[%c0_4, %c0_5] : memref<1x128xf32, #tpu.memory_space<vmem>>, vector<1x128xf32>
    %5 = vector.broadcast %4 : vector<1x128xf32> to vector<256x128xf32>
    %6 = arith.addf %3, %5 : vector<256x128xf32>
    %7 = arith.negf %6 : vector<256x128xf32>
    %8 = math.exp %7 : vector<256x128xf32>
    %cst_6 = arith.constant 1.000000e+00 : f32
    %9 = vector.broadcast %cst_6 : f32 to vector<256x128xf32>
    %10 = arith.addf %9, %8 : vector<256x128xf32>
    %11 = arith.divf %9, %10 : vector<256x128xf32>
    %12 = arith.mulf %6, %11 : vector<256x128xf32>
    %c0_7 = arith.constant 0 : index
    %c0_8 = arith.constant 0 : index
    %c0_9 = arith.constant 0 : index
    %13 = vector.load %arg5[%c0_7, %c0_8, %c0_9] : memref<1x256x128xf32, #tpu.memory_space<vmem>>, vector<1x256x128xf32>
    %14 = vector.shape_cast %13 : vector<1x256x128xf32> to vector<256x128xf32>
    %15 = vector.shape_cast %12 : vector<256x128xf32> to vector<1x256x128xf32>
    tpu.vector_store %arg5[%c0_7, %c0_8, %c0_9], %15 {strides = array<i32>} : memref<1x256x128xf32, #tpu.memory_space<vmem>>, vector<1x256x128xf32>,
    return
  }
  func.func @transform_0(%arg0: i32, %arg1: i32) -> (i32, i32, i32) {
    %c0_i32 = arith.constant 0 : i32
    %c0_i32_0 = arith.constant 0 : i32
    return %arg0, %arg1, %c0_i32 : i32, i32, i32
  }
  func.func @transform_1(%arg0: i32, %arg1: i32) -> (i32, i32) {
    %c0_i32 = arith.constant 0 : i32
    %c0_i32_0 = arith.constant 0 : i32
    %c0_i32_1 = arith.constant 0 : i32
    return %c0_i32, %c0_i32_0 : i32, i32
  }
  func.func @transform_2(%arg0: i32, %arg1: i32) -> (i32, i32) {
    %c0_i32 = arith.constant 0 : i32
    %c0_i32_0 = arith.constant 0 : i32
    %c0_i32_1 = arith.constant 0 : i32
    return %c0_i32, %c0_i32_0 : i32, i32
  }
  func.func @transform_3(%arg0: i32, %arg1: i32) -> (i32, i32, i32) {
    %c0_i32 = arith.constant 0 : i32
    %c0_i32_0 = arith.constant 0 : i32
    return %arg0, %arg1, %c0_i32 : i32, i32, i32
  }
}

</mosaic_0001>

<llo_original>
// kernel: tpu_custom_call.1
$region0: #{tpu_custom_call.1}
  #allocation0 [shape = 'u32[]', space=smem, size = 0x4, offset = 0x4, fixed_abs, tag = 'smem constant byte address 0x4 - core index']
  #allocation1 [shape = 'u32[72,128]{1,0:T(1,128)}', space=vmem, size = 0x9000, scoped, tag = 'internal scratch']
  %s0 = inlined_call_operand.vmem [shape: bf16[2,256,36], index: 0, kind: input, shape index: {}]
  %s1 = inlined_call_operand.vmem [shape: bf16[36,128], index: 1, kind: input, shape index: {}]
  %s2 = inlined_call_operand.vmem [shape: f32[1,128], index: 2, kind: input, shape index: {}]
  %s3 = inlined_call_operand.hbm [shape: f32[2,256,128], index: 3, kind: output, shape index: {}]
  %s4 = sld [smem:[#allocation0]]
  $region45: #{tpu_custom_call.1} parent=0
    _
  %s6 = ssub.s32 1, %s4
  %s7 = scalar_select 0, %s6, %s4
  $region1: #{tpu_custom_call.1} parent=0
    #allocation2 [shape = 'u8[262144]{0}', space=vmem, size = 0x40000, scoped, tag = 'output window, operand 0']
    #allocation3 [shape = 's32[2]{0}', space=sflag, size = 0x8, scoped, tag = 'scoped memory for tpu_custom_call.1']
    %8 = vsyncpa [#allocation3], 0
    %s9 = scalar_lea.sflag [#allocation3], 1
    %10 = vsyncpa %s9, 0
    loop: start=0, step=1, limit=4
    $region2: #{tpu_custom_call.1} parent=1 // loop_pre_header
      _
    $region3: #{tpu_custom_call.1} parent=1 // loop_header
      %s12 = sphi 0, %s16
      %p13 = scmp.ge.s32.totalorder %s12, 4
      %s19 = sphi 0, %s31
      %s20 = sphi 0, %s27
      %s21 = sphi 0, %s19
      %s22 = sphi 0, %s20
      %s23 = sphi 0, %s21
      %s24 = sphi 0, %s22
      %s36 = sphi 0, %s38
      %s39 = sphi 0, %s36
      %s40 = sphi 0, %s39
      %s56 = sphi 0, %s40
      %s60 = sphi 0, %s60
      %s62 = sphi 0, %s60
      %s63 = sphi 0, %s62
      %s77 = sphi 0, %s63
      %s81 = sphi 0, %s81
      %s83 = sphi 0, %s81
      %s84 = sphi 0, %s83
      %s98 = sphi 0, %s84
      %s106 = sphi 0, %s108
      %s109 = sphi 0, %s106
      %s110 = sphi 0, %s109
      %s126 = sphi 0, %s110
    $region4: #{tpu_custom_call.1} parent=1 // loop_header_branch
      %15 = sbr.rel (%p13) target = $region8
    $region5: #{tpu_custom_call.1} parent=1 // loop_body
      %s17 = ssub.s32 %s12, 1
      %s18 = ssub.s32 %s12, 2
      %s25 = sadd.s32 1, %s20
      %p26 = scmp.ge.s32.totalorder %s25, 1
      %s27 = scalar_select %p26, 0, %s25
      %s28 = sadd.s32 1, %s19
      %s29 = scalar_select %p26, %s28, %s19
      %p30 = scmp.ge.s32.totalorder %s29, 2
      %s31 = scalar_select %p30, 0, %s29
      %s32 = ssub.s32 %s19, %s31
      %s33 = ssub.s32 %s20, %s27
      %s34 = sor.u32 %s32, %s33
      %p35 = scmp.eq.s32.totalorder %s34, 0
      %s37 = sadd.s32 %s36, 1
      %s38 = scalar_select %p35, %s36, %s37
      %p41 = pneg %p35
      %p42 = scmp.eq.s32.totalorder %s12, 1
      %p43 = por %p41, %p42
      %p44 = scmp.ne.s32.totalorder %s36, %s39
      %p45 = scmp.eq.s32.totalorder %s12, 0
      %p46 = por %p44, %p45
      %p47 = scmp.ne.s32.totalorder %s36, %s39
      %p48 = scmp.eq.s32.totalorder %s17, 1
      %p49 = por %p47, %p48
      %p50 = scmp.ne.s32.totalorder %s39, %s40
      %p51 = scmp.eq.s32.totalorder %s17, 0
      %p52 = por %p50, %p51
      %p53 = scmp.ne.s32.totalorder %s39, %s40
      %p54 = scmp.eq.s32.totalorder %s18, 1
      %p55 = por %p53, %p54
      %p57 = scmp.ne.s32.totalorder %s40, %s56
      %p58 = scmp.eq.s32.totalorder %s18, 0
      %p59 = por %p57, %p58
      %s61 = sadd.s32 %s60, 1
      %p64 = scmp.eq.s32.totalorder %s12, 1
      %p65 = scmp.ne.s32.totalorder %s60, %s62
      %p66 = scmp.eq.s32.totalorder %s12, 0
      %p67 = por %p65, %p66
      %p68 = scmp.ne.s32.totalorder %s60, %s62
      %p69 = scmp.eq.s32.totalorder %s17, 1
      %p70 = por %p68, %p69
      %p71 = scmp.ne.s32.totalorder %s62, %s63
      %p72 = scmp.eq.s32.totalorder %s17, 0
      %p73 = por %p71, %p72
      %p74 = scmp.ne.s32.totalorder %s62, %s63
      %p75 = scmp.eq.s32.totalorder %s18, 1
      %p76 = por %p74, %p75
      %p78 = scmp.ne.s32.totalorder %s63, %s77
      %p79 = scmp.eq.s32.totalorder %s18, 0
      %p80 = por %p78, %p79
      %s82 = sadd.s32 %s81, 1
      %p85 = scmp.eq.s32.totalorder %s12, 1
      %p86 = scmp.ne.s32.totalorder %s81, %s83
      %p87 = scmp.eq.s32.totalorder %s12, 0
      %p88 = por %p86, %p87
      %p89 = scmp.ne.s32.totalorder %s81, %s83
      %p90 = scmp.eq.s32.totalorder %s17, 1
      %p91 = por %p89, %p90
      %p92 = scmp.ne.s32.totalorder %s83, %s84
      %p93 = scmp.eq.s32.totalorder %s17, 0
      %p94 = por %p92, %p93
      %p95 = scmp.ne.s32.totalorder %s83, %s84
      %p96 = scmp.eq.s32.totalorder %s18, 1
      %p97 = por %p95, %p96
      %p99 = scmp.ne.s32.totalorder %s84, %s98
      %p100 = scmp.eq.s32.totalorder %s18, 0
      %p101 = por %p99, %p100
      %s102 = ssub.s32 %s19, %s31
      %s103 = ssub.s32 %s20, %s27
      %s104 = sor.u32 %s102, %s103
      %p105 = scmp.eq.s32.totalorder %s104, 0
      %s107 = sadd.s32 %s106, 1
      %s108 = scalar_select %p105, %s106, %s107
      %p111 = pneg %p105
      %p112 = scmp.eq.s32.totalorder %s12, 1
      %p113 = por %p111, %p112
      %p114 = scmp.ne.s32.totalorder %s106, %s109
      %p115 = scmp.eq.s32.totalorder %s12, 0
      %p116 = por %p114, %p115
      %p117 = scmp.ne.s32.totalorder %s106, %s109
      %p118 = scmp.eq.s32.totalorder %s17, 1
      %p119 = por %p117, %p118
      %p120 = scmp.ne.s32.totalorder %s109, %s110
      %p121 = scmp.eq.s32.totalorder %s17, 0
      %p122 = por %p120, %p121
      %p123 = scmp.ne.s32.totalorder %s109, %s110
      %p124 = scmp.eq.s32.totalorder %s18, 1
      %p125 = por %p123, %p124
      %p127 = scmp.ne.s32.totalorder %s110, %s126
      %p128 = scmp.eq.s32.totalorder %s18, 0
      %p129 = por %p127, %p128
      %p130 = scmp.le.s32.totalorder 1, %s12
      %p131 = scmp.lt.s32.totalorder %s12, 3
      %p132 = pnand %p130, %p131
      %p133 = pneg %p132
      // Predicated region
      $region9: #{tpu_custom_call.1} parent=5 // pred_check
        _
      $region10: #{tpu_custom_call.1} parent=5 // pred_check_branch
        %135 = sbr.rel (%p132) target = $region12
      $region11: #{tpu_custom_call.1} parent=5 // pred_region
        %s136 = ssub.s32 %s12, 1
        // Predicated region
        $region13: #{tpu_custom_call.1} parent=11 // pred_check
          %p137 = pneg %p73
        $region14: #{tpu_custom_call.1} parent=11 // pred_check_branch
          %139 = sbr.rel (%p137) target = $region16
        $region15: #{tpu_custom_call.1} parent=11 // pred_region
          _
        $region16: #{tpu_custom_call.1} parent=11 // pred_fallthru
          _
        // Predicated region
        $region17: #{tpu_custom_call.1} parent=11 // pred_check
          %p140 = pneg %p94
        $region18: #{tpu_custom_call.1} parent=11 // pred_check_branch
          %142 = sbr.rel (%p140) target = $region20
        $region19: #{tpu_custom_call.1} parent=11 // pred_region
          _
        $region20: #{tpu_custom_call.1} parent=11 // pred_fallthru
          _
      $region12: #{tpu_custom_call.1} parent=5 // pred_fallthru
        _
      %p143 = scmp.lt.s32.totalorder %s12, 2
      // Predicated region
      $region21: #{tpu_custom_call.1} parent=5 // pred_check
        %p144 = pneg %p143
      $region22: #{tpu_custom_call.1} parent=5 // pred_check_branch
        %146 = sbr.rel (%p144) target = $region24
      $region23: #{tpu_custom_call.1} parent=5 // pred_region
        // Predicated region
        $region25: #{tpu_custom_call.1} parent=23 // pred_check
          %p147 = pneg %p46
        $region26: #{tpu_custom_call.1} parent=23 // pred_check_branch
          %149 = sbr.rel (%p147) target = $region28
        $region27: #{tpu_custom_call.1} parent=23 // pred_region
          %s150 = smul.u32 32, %s20
          %p151 = scmp.lt.s32.totalorder %s19, 1
          %s152 = scalar_select %p151, %s19, 1
          %p153 = scmp.lt.s32.totalorder %s150, 31
          %s154 = scalar_select %p153, %s150, 31
          %s155 = smul.addr %s152, 32
          %s156 = sadd.s32 %s154, %s155
          %s157 = smul.addr %s156, 4
          %s158 = scalar_lea.vmem %s0, %s157
          %s159 = smul.u32 32, %s20
        $region28: #{tpu_custom_call.1} parent=23 // pred_fallthru
          _
      $region24: #{tpu_custom_call.1} parent=5 // pred_fallthru
        _
      %p160 = scmp.le.s32.totalorder 1, %s12
      %p161 = scmp.lt.s32.totalorder %s12, 3
      %p162 = pnand %p160, %p161
      %p163 = pneg %p162
      // Predicated region
      $region29: #{tpu_custom_call.1} parent=5 // pred_check
        _
      $region30: #{tpu_custom_call.1} parent=5 // pred_check_branch
        %165 = sbr.rel (%p162) target = $region32
      $region31: #{tpu_custom_call.1} parent=5 // pred_region
        %s166 = ssub.s32 %s12, 1
        %s167 = smul.u32 32, %s22
        %p168 = scmp.lt.s32.totalorder %s21, 1
        %s169 = scalar_select %p168, %s21, 1
        %p170 = scmp.lt.s32.totalorder %s167, 31
        %s171 = scalar_select %p170, %s167, 31
        %s172 = smul.addr %s169, 32
        %s173 = sadd.s32 %s171, %s172
        %s174 = smul.addr %s173, 4
        %s175 = scalar_lea.vmem %s0, %s174
        %p176 = pneg %p52
        %p177 = pneg %p49
        %p178 = pneg %p73
        %p179 = pneg %p70
        %p180 = pneg %p94
        %p181 = pneg %p91
        %p182 = pneg %p122
        %p183 = pneg %p119
        %s184 = sand.u32 %s109, 1
        %s185 = scalar_lea.sflag [#allocation3], %s184
        %s186 = sand.u32 %s109, 1
        %s187 = smul.addr %s186, 256
        %s188 = scalar_lea.vmem [#allocation2], %s187
        %s189 = smul.u32 32, %s22
        %p190 = scmp.lt.s32.totalorder %s21, 1
        %s191 = scalar_select %p190, %s21, 1
        %p192 = scmp.lt.s32.totalorder %s189, 31
        %s193 = scalar_select %p192, %s189, 31
        %s194 = smul.addr %s191, 32
        %s195 = sadd.s32 %s193, %s194
        %s196 = smul.addr %s195, 4
        %s197 = scalar_lea.vmem %s0, %s196
        %s198 = smul.u32 32, %s22
        %s199 = smul.u32 32, %s22
        %v201 = vld [vmem:[%s197] sm:$0xf]
        %v202 = vld [vmem:[%s197 + $0x4] sm:$0xf]
        %v203 = vld [vmem:[%s197 + $0x8] sm:$0xf]
        %v204 = vld [vmem:[%s197 + $0xc] sm:$0xf]
        %v205 = vld [vmem:[%s197 + $0x10] sm:$0xf]
        %v206 = vld [vmem:[%s197 + $0x14] sm:$0xf]
        %v207 = vld [vmem:[%s197 + $0x18] sm:$0xf]
        %v208 = vld [vmem:[%s197 + $0x1c] sm:$0xf]
        %v209 = vld [vmem:[%s197 + $0x20] sm:$0xf]
        %v210 = vld [vmem:[%s197 + $0x24] sm:$0xf]
        %v211 = vld [vmem:[%s197 + $0x28] sm:$0xf]
        %v212 = vld [vmem:[%s197 + $0x2c] sm:$0xf]
        %v213 = vld [vmem:[%s197 + $0x30] sm:$0xf]
        %v214 = vld [vmem:[%s197 + $0x34] sm:$0xf]
        %v215 = vld [vmem:[%s197 + $0x38] sm:$0xf]
        %v216 = vld [vmem:[%s197 + $0x3c] sm:$0xf]
        %v217 = vld [vmem:[%s197 + $0x40] sm:$0xf]
        %v218 = vld [vmem:[%s197 + $0x44] sm:$0xf]
        %v219 = vld [vmem:[%s197 + $0x48] sm:$0xf]
        %v220 = vld [vmem:[%s197 + $0x4c] sm:$0xf]
        %v221 = vld [vmem:[%s197 + $0x50] sm:$0xf]
        %v222 = vld [vmem:[%s197 + $0x54] sm:$0xf]
        %v223 = vld [vmem:[%s197 + $0x58] sm:$0xf]
        %v224 = vld [vmem:[%s197 + $0x5c] sm:$0xf]
        %v225 = vld [vmem:[%s197 + $0x60] sm:$0xf]
        %v226 = vld [vmem:[%s197 + $0x64] sm:$0xf]
        %v227 = vld [vmem:[%s197 + $0x68] sm:$0xf]
        %v228 = vld [vmem:[%s197 + $0x6c] sm:$0xf]
        %v229 = vld [vmem:[%s197 + $0x70] sm:$0xf]
        %v230 = vld [vmem:[%s197 + $0x74] sm:$0xf]
        %v231 = vld [vmem:[%s197 + $0x78] sm:$0xf]
        %v232 = vld [vmem:[%s197 + $0x7c] sm:$0xf]
        %v233 = vld [vmem:[%s1] sm:$0xf]
        %v234 = vld [vmem:[%s1 + $0x4] sm:$0xf]
        %v235 = vld [vmem:[%s1 + $0x8] sm:$0xf]
        %v236 = vld [vmem:[%s1 + $0xc] sm:$0xf]
        %v237 = vld [vmem:[%s1 + $0x10] sm:$0x3]
        %v238 = vld [vmem:[%s2] sm:$0x1]
        %v240 = vperm.slane %v238, 0
        %v274 = vunpack.c.l.b16 %v201
        %v275 = vunpack.c.l.b16 %v202
        %v276 = vunpack.c.l.b16 %v203
        %v277 = vunpack.c.l.b16 %v204
        %v278 = vunpack.c.l.b16 %v205
        %v279 = vunpack.c.l.b16 %v206
        %v280 = vunpack.c.l.b16 %v207
        %v281 = vunpack.c.l.b16 %v208
        %v282 = vunpack.c.l.b16 %v209
        %v283 = vunpack.c.l.b16 %v210
        %v284 = vunpack.c.l.b16 %v211
        %v285 = vunpack.c.l.b16 %v212
        %v286 = vunpack.c.l.b16 %v213
        %v287 = vunpack.c.l.b16 %v214
        %v288 = vunpack.c.l.b16 %v215
        %v289 = vunpack.c.l.b16 %v216
        %v290 = vunpack.c.l.b16 %v217
        %v291 = vunpack.c.l.b16 %v218
        %v292 = vunpack.c.l.b16 %v219
        %v293 = vunpack.c.l.b16 %v220
        %v294 = vunpack.c.l.b16 %v221
        %v295 = vunpack.c.l.b16 %v222
        %v296 = vunpack.c.l.b16 %v223
        %v297 = vunpack.c.l.b16 %v224
        %v298 = vunpack.c.l.b16 %v225
        %v299 = vunpack.c.l.b16 %v226
        %v300 = vunpack.c.l.b16 %v227
        %v301 = vunpack.c.l.b16 %v228
        %v302 = vunpack.c.l.b16 %v229
        %v303 = vunpack.c.l.b16 %v230
        %v304 = vunpack.c.l.b16 %v231
        %v305 = vunpack.c.l.b16 %v232
        %v306 = vpack.c.b16 %v275, %v274
        %v307 = vpack.c.b16 %v277, %v276
        %v308 = vpack.c.b16 %v279, %v278
        %v309 = vpack.c.b16 %v281, %v280
        %v310 = vpack.c.b16 %v283, %v282
        %v311 = vpack.c.b16 %v285, %v284
        %v312 = vpack.c.b16 %v287, %v286
        %v313 = vpack.c.b16 %v289, %v288
        %v314 = vpack.c.b16 %v291, %v290
        %v315 = vpack.c.b16 %v293, %v292
        %v316 = vpack.c.b16 %v295, %v294
        %v317 = vpack.c.b16 %v297, %v296
        %v318 = vpack.c.b16 %v299, %v298
        %v319 = vpack.c.b16 %v301, %v300
        %v320 = vpack.c.b16 %v303, %v302
        %v321 = vpack.c.b16 %v305, %v304
        %v327 = vunpack.c.l.b16 %v233
        %v328 = vunpack.c.l.b16 %v234
        %v329 = vunpack.c.l.b16 %v235
        %v330 = vunpack.c.l.b16 %v236
        %v331 = vunpack.c.l.b16 %v237
        %v332 = vpack.c.b16 %v328, %v327
        %v333 = vpack.c.b16 %v330, %v329
        %v334 = vpack.c.b16 %v331, %v331
        %vm337 = vcmask 293888
        %v339 = vsel %vm337, %v306, 0
        %v342 = vsel %vm337, %v307, 0
        %v345 = vsel %vm337, %v308, 0
        %v348 = vsel %vm337, %v309, 0
        %v351 = vsel %vm337, %v310, 0
        %v354 = vsel %vm337, %v311, 0
        %v357 = vsel %vm337, %v312, 0
        %v360 = vsel %vm337, %v313, 0
        %v363 = vsel %vm337, %v314, 0
        %v366 = vsel %vm337, %v315, 0
        %v369 = vsel %vm337, %v316, 0
        %v372 = vsel %vm337, %v317, 0
        %v375 = vsel %vm337, %v318, 0
        %v378 = vsel %vm337, %v319, 0
        %v381 = vsel %vm337, %v320, 0
        %v384 = vsel %vm337, %v321, 0
        %vm386 = vcmask 1041408
        %v388 = vsel %vm386, %v334, 0
        %390 = vmatpush.bf16.msra.mxu0 0
        %391 = vmatpush.bf16.msra.mxu0 0
        %392 = vmatpush.bf16.msra.mxu0 0
        %393 = vmatpush.bf16.msra.mxu0 0
        %394 = vmatpush.bf16.msra.mxu0 0
        %395 = vmatpush.bf16.msra.mxu0 %v388
        %396 = vmatpush.bf16.msra.mxu0 %v333
        %397 = vmatpush.bf16.msra.mxu0 %v332
        %398 = vmatmul.bf16.gmra.mxu0 %v339
        %v399 = vpop.f32.mrf.mxu0
        %v400 = vadd.f32 %v240, %v399
        %v401 = vpop.f32.mrf.mxu0
        %v402 = vadd.f32 %v240, %v401
        %403 = vmatmul.bf16.gmra.mxu0 %v342
        %v404 = vpop.f32.mrf.mxu0
        %v405 = vadd.f32 %v240, %v404
        %v406 = vpop.f32.mrf.mxu0
        %v407 = vadd.f32 %v240, %v406
        %408 = vmatmul.bf16.gmra.mxu0 %v345
        %v409 = vpop.f32.mrf.mxu0
        %v410 = vadd.f32 %v240, %v409
        %v411 = vpop.f32.mrf.mxu0
        %v412 = vadd.f32 %v240, %v411
        %413 = vmatmul.bf16.gmra.mxu0 %v348
        %v414 = vpop.f32.mrf.mxu0
        %v415 = vadd.f32 %v240, %v414
        %v416 = vpop.f32.mrf.mxu0
        %v417 = vadd.f32 %v240, %v416
        %418 = vmatmul.bf16.gmra.mxu0 %v351
        %v419 = vpop.f32.mrf.mxu0
        %v420 = vadd.f32 %v240, %v419
        %v421 = vpop.f32.mrf.mxu0
        %v422 = vadd.f32 %v240, %v421
        %423 = vmatmul.bf16.gmra.mxu0 %v354
        %v424 = vpop.f32.mrf.mxu0
        %v425 = vadd.f32 %v240, %v424
        %v426 = vpop.f32.mrf.mxu0
        %v427 = vadd.f32 %v240, %v426
        %428 = vmatmul.bf16.gmra.mxu0 %v357
        %v429 = vpop.f32.mrf.mxu0
        %v430 = vadd.f32 %v240, %v429
        %v431 = vpop.f32.mrf.mxu0
        %v432 = vadd.f32 %v240, %v431
        %433 = vmatmul.bf16.gmra.mxu0 %v360
        %v434 = vpop.f32.mrf.mxu0
        %v435 = vadd.f32 %v240, %v434
        %v436 = vpop.f32.mrf.mxu0
        %v437 = vadd.f32 %v240, %v436
        %438 = vmatmul.bf16.gmra.mxu0 %v363
        %v439 = vpop.f32.mrf.mxu0
        %v440 = vadd.f32 %v240, %v439
        %v441 = vpop.f32.mrf.mxu0
        %v442 = vadd.f32 %v240, %v441
        %443 = vmatmul.bf16.gmra.mxu0 %v366
        %v444 = vpop.f32.mrf.mxu0
        %v445 = vadd.f32 %v240, %v444
        %v446 = vpop.f32.mrf.mxu0
        %v447 = vadd.f32 %v240, %v446
        %448 = vmatmul.bf16.gmra.mxu0 %v369
        %v449 = vpop.f32.mrf.mxu0
        %v450 = vadd.f32 %v240, %v449
        %v451 = vpop.f32.mrf.mxu0
        %v452 = vadd.f32 %v240, %v451
        %453 = vmatmul.bf16.gmra.mxu0 %v372
        %v454 = vpop.f32.mrf.mxu0
        %v455 = vadd.f32 %v240, %v454
        %v456 = vpop.f32.mrf.mxu0
        %v457 = vadd.f32 %v240, %v456
        %458 = vmatmul.bf16.gmra.mxu0 %v375
        %v459 = vpop.f32.mrf.mxu0
        %v460 = vadd.f32 %v240, %v459
        %v461 = vpop.f32.mrf.mxu0
        %v462 = vadd.f32 %v240, %v461
        %463 = vmatmul.bf16.gmra.mxu0 %v378
        %v464 = vpop.f32.mrf.mxu0
        %v465 = vadd.f32 %v240, %v464
        %v466 = vpop.f32.mrf.mxu0
        %v467 = vadd.f32 %v240, %v466
        %468 = vmatmul.bf16.gmra.mxu0 %v381
        %v469 = vpop.f32.mrf.mxu0
        %v470 = vadd.f32 %v240, %v469
        %v471 = vpop.f32.mrf.mxu0
        %v472 = vadd.f32 %v240, %v471
        %473 = vmatmul.bf16.gmra.mxu0 %v384
        %v474 = vpop.f32.mrf.mxu0
        %v475 = vadd.f32 %v240, %v474
        %v476 = vpop.f32.mrf.mxu0
        %v477 = vadd.f32 %v240, %v476
        %478 = vdwg.mxu0
        %v479 = vxor.u32 %v400, 2147483648
        %v480 = vxor.u32 %v402, 2147483648
        %v481 = vxor.u32 %v405, 2147483648
        %v482 = vxor.u32 %v407, 2147483648
        %v483 = vxor.u32 %v410, 2147483648
        %v484 = vxor.u32 %v412, 2147483648
        %v485 = vxor.u32 %v415, 2147483648
        %v486 = vxor.u32 %v417, 2147483648
        %v487 = vxor.u32 %v420, 2147483648
        %v488 = vxor.u32 %v422, 2147483648
        %v489 = vxor.u32 %v425, 2147483648
        %v490 = vxor.u32 %v427, 2147483648
        %v491 = vxor.u32 %v430, 2147483648
        %v492 = vxor.u32 %v432, 2147483648
        %v493 = vxor.u32 %v435, 2147483648
        %v494 = vxor.u32 %v437, 2147483648
        %v495 = vxor.u32 %v440, 2147483648
        %v496 = vxor.u32 %v442, 2147483648
        %v497 = vxor.u32 %v445, 2147483648
        %v498 = vxor.u32 %v447, 2147483648
        %v499 = vxor.u32 %v450, 2147483648
        %v500 = vxor.u32 %v452, 2147483648
        %v501 = vxor.u32 %v455, 2147483648
        %v502 = vxor.u32 %v457, 2147483648
        %v503 = vxor.u32 %v460, 2147483648
        %v504 = vxor.u32 %v462, 2147483648
        %v505 = vxor.u32 %v465, 2147483648
        %v506 = vxor.u32 %v467, 2147483648
        %v507 = vxor.u32 %v470, 2147483648
        %v508 = vxor.u32 %v472, 2147483648
        %v509 = vxor.u32 %v475, 2147483648
        %v510 = vxor.u32 %v477, 2147483648
        %v511 = vmul.f32 %v479, 1.442695
        %v512 = vpow.pop %v511
        %v513 = vmul.f32 %v480, 1.442695
        %v514 = vpow.pop %v513
        %v515 = vmul.f32 %v481, 1.442695
        %v516 = vpow.pop %v515
        %v517 = vmul.f32 %v482, 1.442695
        %v518 = vpow.pop %v517
        %v519 = vmul.f32 %v483, 1.442695
        %v520 = vpow.pop %v519
        %v521 = vmul.f32 %v484, 1.442695
        %v522 = vpow.pop %v521
        %v523 = vmul.f32 %v485, 1.442695
        %v524 = vpow.pop %v523
        %v525 = vmul.f32 %v486, 1.442695
        %v526 = vpow.pop %v525
        %v527 = vmul.f32 %v487, 1.442695
        %v528 = vpow.pop %v527
        %v529 = vmul.f32 %v488, 1.442695
        %v530 = vpow.pop %v529
        %v531 = vmul.f32 %v489, 1.442695
        %v532 = vpow.pop %v531
        %v533 = vmul.f32 %v490, 1.442695
        %v534 = vpow.pop %v533
        %v535 = vmul.f32 %v491, 1.442695
        %v536 = vpow.pop %v535
        %v537 = vmul.f32 %v492, 1.442695
        %v538 = vpow.pop %v537
        %v539 = vmul.f32 %v493, 1.442695
        %v540 = vpow.pop %v539
        %v541 = vmul.f32 %v494, 1.442695
        %v542 = vpow.pop %v541
        %v543 = vmul.f32 %v495, 1.442695
        %v544 = vpow.pop %v543
        %v545 = vmul.f32 %v496, 1.442695
        %v546 = vpow.pop %v545
        %v547 = vmul.f32 %v497, 1.442695
        %v548 = vpow.pop %v547
        %v549 = vmul.f32 %v498, 1.442695
        %v550 = vpow.pop %v549
        %v551 = vmul.f32 %v499, 1.442695
        %v552 = vpow.pop %v551
        %v553 = vmul.f32 %v500, 1.442695
        %v554 = vpow.pop %v553
        %v555 = vmul.f32 %v501, 1.442695
        %v556 = vpow.pop %v555
        %v557 = vmul.f32 %v502, 1.442695
        %v558 = vpow.pop %v557
        %v559 = vmul.f32 %v503, 1.442695
        %v560 = vpow.pop %v559
        %v561 = vmul.f32 %v504, 1.442695
        %v562 = vpow.pop %v561
        %v563 = vmul.f32 %v505, 1.442695
        %v564 = vpow.pop %v563
        %v565 = vmul.f32 %v506, 1.442695
        %v566 = vpow.pop %v565
        %v567 = vmul.f32 %v507, 1.442695
        %v568 = vpow.pop %v567
        %v569 = vmul.f32 %v508, 1.442695
        %v570 = vpow.pop %v569
        %v571 = vmul.f32 %v509, 1.442695
        %v572 = vpow.pop %v571
        %v573 = vmul.f32 %v510, 1.442695
        %v574 = vpow.pop %v573
        %v575 = vadd.f32 %v512, 1.0
        %v576 = vadd.f32 %v514, 1.0
        %v577 = vadd.f32 %v516, 1.0
        %v578 = vadd.f32 %v518, 1.0
        %v579 = vadd.f32 %v520, 1.0
        %v580 = vadd.f32 %v522, 1.0
        %v581 = vadd.f32 %v524, 1.0
        %v582 = vadd.f32 %v526, 1.0
        %v583 = vadd.f32 %v528, 1.0
        %v584 = vadd.f32 %v530, 1.0
        %v585 = vadd.f32 %v532, 1.0
        %v586 = vadd.f32 %v534, 1.0
        %v587 = vadd.f32 %v536, 1.0
        %v588 = vadd.f32 %v538, 1.0
        %v589 = vadd.f32 %v540, 1.0
        %v590 = vadd.f32 %v542, 1.0
        %v591 = vadd.f32 %v544, 1.0
        %v592 = vadd.f32 %v546, 1.0
        %v593 = vadd.f32 %v548, 1.0
        %v594 = vadd.f32 %v550, 1.0
        %v595 = vadd.f32 %v552, 1.0
        %v596 = vadd.f32 %v554, 1.0
        %v597 = vadd.f32 %v556, 1.0
        %v598 = vadd.f32 %v558, 1.0
        %v599 = vadd.f32 %v560, 1.0
        %v600 = vadd.f32 %v562, 1.0
        %v601 = vadd.f32 %v564, 1.0
        %v602 = vadd.f32 %v566, 1.0
        %v603 = vadd.f32 %v568, 1.0
        %v604 = vadd.f32 %v570, 1.0
        %v605 = vadd.f32 %v572, 1.0
        %v606 = vadd.f32 %v574, 1.0
        %v607 = vrcp.pop %v575
        %v608 = vmul.f32 %v575, %v607
        %v609 = vsub.f32 1.0, %v608
        %v610 = vmul.f32 %v607, %v609
        %v611 = vadd.f32 %v607, %v610
        %vm612 = vweird.f32 %v575
        %vm613 = vweird.f32 %v607
        %vm614 = vmor %vm612, %vm613
        %v615 = vsel %vm614, %v607, %v611
        %v616 = vand.u32 2147483647, %v575
        %vm617 = vcmp.eq.f32.partialorder %v616, 8.507059e+37
        %v618 = vand.u32 %v575, 2147483648
        %v619 = vor.u32 1.1754944e-38, %v618
        %v620 = vsel %vm617, %v619, %v615
        %v621 = vmul.f32 1.0, %v620
        %v622 = vrcp.pop %v576
        %v623 = vmul.f32 %v576, %v622
        %v624 = vsub.f32 1.0, %v623
        %v625 = vmul.f32 %v622, %v624
        %v626 = vadd.f32 %v622, %v625
        %vm627 = vweird.f32 %v576
        %vm628 = vweird.f32 %v622
        %vm629 = vmor %vm627, %vm628
        %v630 = vsel %vm629, %v622, %v626
        %v631 = vand.u32 2147483647, %v576
        %vm632 = vcmp.eq.f32.partialorder %v631, 8.507059e+37
        %v633 = vand.u32 %v576, 2147483648
        %v634 = vor.u32 1.1754944e-38, %v633
        %v635 = vsel %vm632, %v634, %v630
        %v636 = vmul.f32 1.0, %v635
        %v637 = vrcp.pop %v577
        %v638 = vmul.f32 %v577, %v637
        %v639 = vsub.f32 1.0, %v638
        %v640 = vmul.f32 %v637, %v639
        %v641 = vadd.f32 %v637, %v640
        %vm642 = vweird.f32 %v577
        %vm643 = vweird.f32 %v637
        %vm644 = vmor %vm642, %vm643
        %v645 = vsel %vm644, %v637, %v641
        %v646 = vand.u32 2147483647, %v577
        %vm647 = vcmp.eq.f32.partialorder %v646, 8.507059e+37
        %v648 = vand.u32 %v577, 2147483648
        %v649 = vor.u32 1.1754944e-38, %v648
        %v650 = vsel %vm647, %v649, %v645
        %v651 = vmul.f32 1.0, %v650
        %v652 = vrcp.pop %v578
        %v653 = vmul.f32 %v578, %v652
        %v654 = vsub.f32 1.0, %v653
        %v655 = vmul.f32 %v652, %v654
        %v656 = vadd.f32 %v652, %v655
        %vm657 = vweird.f32 %v578
        %vm658 = vweird.f32 %v652
        %vm659 = vmor %vm657, %vm658
        %v660 = vsel %vm659, %v652, %v656
        %v661 = vand.u32 2147483647, %v578
        %vm662 = vcmp.eq.f32.partialorder %v661, 8.507059e+37
        %v663 = vand.u32 %v578, 2147483648
        %v664 = vor.u32 1.1754944e-38, %v663
        %v665 = vsel %vm662, %v664, %v660
        %v666 = vmul.f32 1.0, %v665
        %v667 = vrcp.pop %v579
        %v668 = vmul.f32 %v579, %v667
        %v669 = vsub.f32 1.0, %v668
        %v670 = vmul.f32 %v667, %v669
        %v671 = vadd.f32 %v667, %v670
        %vm672 = vweird.f32 %v579
        %vm673 = vweird.f32 %v667
        %vm674 = vmor %vm672, %vm673
        %v675 = vsel %vm674, %v667, %v671
        %v676 = vand.u32 2147483647, %v579
        %vm677 = vcmp.eq.f32.partialorder %v676, 8.507059e+37
        %v678 = vand.u32 %v579, 2147483648
        %v679 = vor.u32 1.1754944e-38, %v678
        %v680 = vsel %vm677, %v679, %v675
        %v681 = vmul.f32 1.0, %v680
        %v682 = vrcp.pop %v580
        %v683 = vmul.f32 %v580, %v682
        %v684 = vsub.f32 1.0, %v683
        %v685 = vmul.f32 %v682, %v684
        %v686 = vadd.f32 %v682, %v685
        %vm687 = vweird.f32 %v580
        %vm688 = vweird.f32 %v682
        %vm689 = vmor %vm687, %vm688
        %v690 = vsel %vm689, %v682, %v686
        %v691 = vand.u32 2147483647, %v580
        %vm692 = vcmp.eq.f32.partialorder %v691, 8.507059e+37
        %v693 = vand.u32 %v580, 2147483648
        %v694 = vor.u32 1.1754944e-38, %v693
        %v695 = vsel %vm692, %v694, %v690
        %v696 = vmul.f32 1.0, %v695
        %v697 = vrcp.pop %v581
        %v698 = vmul.f32 %v581, %v697
        %v699 = vsub.f32 1.0, %v698
        %v700 = vmul.f32 %v697, %v699
        %v701 = vadd.f32 %v697, %v700
        %vm702 = vweird.f32 %v581
        %vm703 = vweird.f32 %v697
        %vm704 = vmor %vm702, %vm703
        %v705 = vsel %vm704, %v697, %v701
        %v706 = vand.u32 2147483647, %v581
        %vm707 = vcmp.eq.f32.partialorder %v706, 8.507059e+37
        %v708 = vand.u32 %v581, 2147483648
        %v709 = vor.u32 1.1754944e-38, %v708
        %v710 = vsel %vm707, %v709, %v705
        %v711 = vmul.f32 1.0, %v710
        %v712 = vrcp.pop %v582
        %v713 = vmul.f32 %v582, %v712
        %v714 = vsub.f32 1.0, %v713
        %v715 = vmul.f32 %v712, %v714
        %v716 = vadd.f32 %v712, %v715
        %vm717 = vweird.f32 %v582
        %vm718 = vweird.f32 %v712
        %vm719 = vmor %vm717, %vm718
        %v720 = vsel %vm719, %v712, %v716
        %v721 = vand.u32 2147483647, %v582
        %vm722 = vcmp.eq.f32.partialorder %v721, 8.507059e+37
        %v723 = vand.u32 %v582, 2147483648
        %v724 = vor.u32 1.1754944e-38, %v723
        %v725 = vsel %vm722, %v724, %v720
        %v726 = vmul.f32 1.0, %v725
        %v727 = vrcp.pop %v583
        %v728 = vmul.f32 %v583, %v727
        %v729 = vsub.f32 1.0, %v728
        %v730 = vmul.f32 %v727, %v729
        %v731 = vadd.f32 %v727, %v730
        %vm732 = vweird.f32 %v583
        %vm733 = vweird.f32 %v727
        %vm734 = vmor %vm732, %vm733
        %v735 = vsel %vm734, %v727, %v731
        %v736 = vand.u32 2147483647, %v583
        %vm737 = vcmp.eq.f32.partialorder %v736, 8.507059e+37
        %v738 = vand.u32 %v583, 2147483648
        %v739 = vor.u32 1.1754944e-38, %v738
        %v740 = vsel %vm737, %v739, %v735
        %v741 = vmul.f32 1.0, %v740
        %v742 = vrcp.pop %v584
        %v743 = vmul.f32 %v584, %v742
        %v744 = vsub.f32 1.0, %v743
        %v745 = vmul.f32 %v742, %v744
        %v746 = vadd.f32 %v742, %v745
        %vm747 = vweird.f32 %v584
        %vm748 = vweird.f32 %v742
        %vm749 = vmor %vm747, %vm748
        %v750 = vsel %vm749, %v742, %v746
        %v751 = vand.u32 2147483647, %v584
        %vm752 = vcmp.eq.f32.partialorder %v751, 8.507059e+37
        %v753 = vand.u32 %v584, 2147483648
        %v754 = vor.u32 1.1754944e-38, %v753
        %v755 = vsel %vm752, %v754, %v750
        %v756 = vmul.f32 1.0, %v755
        %v757 = vrcp.pop %v585
        %v758 = vmul.f32 %v585, %v757
        %v759 = vsub.f32 1.0, %v758
        %v760 = vmul.f32 %v757, %v759
        %v761 = vadd.f32 %v757, %v760
        %vm762 = vweird.f32 %v585
        %vm763 = vweird.f32 %v757
        %vm764 = vmor %vm762, %vm763
        %v765 = vsel %vm764, %v757, %v761
        %v766 = vand.u32 2147483647, %v585
        %vm767 = vcmp.eq.f32.partialorder %v766, 8.507059e+37
        %v768 = vand.u32 %v585, 2147483648
        %v769 = vor.u32 1.1754944e-38, %v768
        %v770 = vsel %vm767, %v769, %v765
        %v771 = vmul.f32 1.0, %v770
        %v772 = vrcp.pop %v586
        %v773 = vmul.f32 %v586, %v772
        %v774 = vsub.f32 1.0, %v773
        %v775 = vmul.f32 %v772, %v774
        %v776 = vadd.f32 %v772, %v775
        %vm777 = vweird.f32 %v586
        %vm778 = vweird.f32 %v772
        %vm779 = vmor %vm777, %vm778
        %v780 = vsel %vm779, %v772, %v776
        %v781 = vand.u32 2147483647, %v586
        %vm782 = vcmp.eq.f32.partialorder %v781, 8.507059e+37
        %v783 = vand.u32 %v586, 2147483648
        %v784 = vor.u32 1.1754944e-38, %v783
        %v785 = vsel %vm782, %v784, %v780
        %v786 = vmul.f32 1.0, %v785
        %v787 = vrcp.pop %v587
        %v788 = vmul.f32 %v587, %v787
        %v789 = vsub.f32 1.0, %v788
        %v790 = vmul.f32 %v787, %v789
        %v791 = vadd.f32 %v787, %v790
        %vm792 = vweird.f32 %v587
        %vm793 = vweird.f32 %v787
        %vm794 = vmor %vm792, %vm793
        %v795 = vsel %vm794, %v787, %v791
        %v796 = vand.u32 2147483647, %v587
        %vm797 = vcmp.eq.f32.partialorder %v796, 8.507059e+37
        %v798 = vand.u32 %v587, 2147483648
        %v799 = vor.u32 1.1754944e-38, %v798
        %v800 = vsel %vm797, %v799, %v795
        %v801 = vmul.f32 1.0, %v800
        %v802 = vrcp.pop %v588
        %v803 = vmul.f32 %v588, %v802
        %v804 = vsub.f32 1.0, %v803
        %v805 = vmul.f32 %v802, %v804
        %v806 = vadd.f32 %v802, %v805
        %vm807 = vweird.f32 %v588
        %vm808 = vweird.f32 %v802
        %vm809 = vmor %vm807, %vm808
        %v810 = vsel %vm809, %v802, %v806
        %v811 = vand.u32 2147483647, %v588
        %vm812 = vcmp.eq.f32.partialorder %v811, 8.507059e+37
        %v813 = vand.u32 %v588, 2147483648
        %v814 = vor.u32 1.1754944e-38, %v813
        %v815 = vsel %vm812, %v814, %v810
        %v816 = vmul.f32 1.0, %v815
        %v817 = vrcp.pop %v589
        %v818 = vmul.f32 %v589, %v817
        %v819 = vsub.f32 1.0, %v818
        %v820 = vmul.f32 %v817, %v819
        %v821 = vadd.f32 %v817, %v820
        %vm822 = vweird.f32 %v589
        %vm823 = vweird.f32 %v817
        %vm824 = vmor %vm822, %vm823
        %v825 = vsel %vm824, %v817, %v821
        %v826 = vand.u32 2147483647, %v589
        %vm827 = vcmp.eq.f32.partialorder %v826, 8.507059e+37
        %v828 = vand.u32 %v589, 2147483648
        %v829 = vor.u32 1.1754944e-38, %v828
        %v830 = vsel %vm827, %v829, %v825
        %v831 = vmul.f32 1.0, %v830
        %v832 = vrcp.pop %v590
        %v833 = vmul.f32 %v590, %v832
        %v834 = vsub.f32 1.0, %v833
        %v835 = vmul.f32 %v832, %v834
        %v836 = vadd.f32 %v832, %v835
        %vm837 = vweird.f32 %v590
        %vm838 = vweird.f32 %v832
        %vm839 = vmor %vm837, %vm838
        %v840 = vsel %vm839, %v832, %v836
        %v841 = vand.u32 2147483647, %v590
        %vm842 = vcmp.eq.f32.partialorder %v841, 8.507059e+37
        %v843 = vand.u32 %v590, 2147483648
        %v844 = vor.u32 1.1754944e-38, %v843
        %v845 = vsel %vm842, %v844, %v840
        %v846 = vmul.f32 1.0, %v845
        %v847 = vrcp.pop %v591
        %v848 = vmul.f32 %v591, %v847
        %v849 = vsub.f32 1.0, %v848
        %v850 = vmul.f32 %v847, %v849
        %v851 = vadd.f32 %v847, %v850
        %vm852 = vweird.f32 %v591
        %vm853 = vweird.f32 %v847
        %vm854 = vmor %vm852, %vm853
        %v855 = vsel %vm854, %v847, %v851
        %v856 = vand.u32 2147483647, %v591
        %vm857 = vcmp.eq.f32.partialorder %v856, 8.507059e+37
        %v858 = vand.u32 %v591, 2147483648
        %v859 = vor.u32 1.1754944e-38, %v858
        %v860 = vsel %vm857, %v859, %v855
        %v861 = vmul.f32 1.0, %v860
        %v862 = vrcp.pop %v592
        %v863 = vmul.f32 %v592, %v862
        %v864 = vsub.f32 1.0, %v863
        %v865 = vmul.f32 %v862, %v864
        %v866 = vadd.f32 %v862, %v865
        %vm867 = vweird.f32 %v592
        %vm868 = vweird.f32 %v862
        %vm869 = vmor %vm867, %vm868
        %v870 = vsel %vm869, %v862, %v866
        %v871 = vand.u32 2147483647, %v592
        %vm872 = vcmp.eq.f32.partialorder %v871, 8.507059e+37
        %v873 = vand.u32 %v592, 2147483648
        %v874 = vor.u32 1.1754944e-38, %v873
        %v875 = vsel %vm872, %v874, %v870
        %v876 = vmul.f32 1.0, %v875
        %v877 = vrcp.pop %v593
        %v878 = vmul.f32 %v593, %v877
        %v879 = vsub.f32 1.0, %v878
        %v880 = vmul.f32 %v877, %v879
        %v881 = vadd.f32 %v877, %v880
        %vm882 = vweird.f32 %v593
        %vm883 = vweird.f32 %v877
        %vm884 = vmor %vm882, %vm883
        %v885 = vsel %vm884, %v877, %v881
        %v886 = vand.u32 2147483647, %v593
        %vm887 = vcmp.eq.f32.partialorder %v886, 8.507059e+37
        %v888 = vand.u32 %v593, 2147483648
        %v889 = vor.u32 1.1754944e-38, %v888
        %v890 = vsel %vm887, %v889, %v885
        %v891 = vmul.f32 1.0, %v890
        %v892 = vrcp.pop %v594
        %v893 = vmul.f32 %v594, %v892
        %v894 = vsub.f32 1.0, %v893
        %v895 = vmul.f32 %v892, %v894
        %v896 = vadd.f32 %v892, %v895
        %vm897 = vweird.f32 %v594
        %vm898 = vweird.f32 %v892
        %vm899 = vmor %vm897, %vm898
        %v900 = vsel %vm899, %v892, %v896
        %v901 = vand.u32 2147483647, %v594
        %vm902 = vcmp.eq.f32.partialorder %v901, 8.507059e+37
        %v903 = vand.u32 %v594, 2147483648
        %v904 = vor.u32 1.1754944e-38, %v903
        %v905 = vsel %vm902, %v904, %v900
        %v906 = vmul.f32 1.0, %v905
        %v907 = vrcp.pop %v595
        %v908 = vmul.f32 %v595, %v907
        %v909 = vsub.f32 1.0, %v908
        %v910 = vmul.f32 %v907, %v909
        %v911 = vadd.f32 %v907, %v910
        %vm912 = vweird.f32 %v595
        %vm913 = vweird.f32 %v907
        %vm914 = vmor %vm912, %vm913
        %v915 = vsel %vm914, %v907, %v911
        %v916 = vand.u32 2147483647, %v595
        %vm917 = vcmp.eq.f32.partialorder %v916, 8.507059e+37
        %v918 = vand.u32 %v595, 2147483648
        %v919 = vor.u32 1.1754944e-38, %v918
        %v920 = vsel %vm917, %v919, %v915
        %v921 = vmul.f32 1.0, %v920
        %v922 = vrcp.pop %v596
        %v923 = vmul.f32 %v596, %v922
        %v924 = vsub.f32 1.0, %v923
        %v925 = vmul.f32 %v922, %v924
        %v926 = vadd.f32 %v922, %v925
        %vm927 = vweird.f32 %v596
        %vm928 = vweird.f32 %v922
        %vm929 = vmor %vm927, %vm928
        %v930 = vsel %vm929, %v922, %v926
        %v931 = vand.u32 2147483647, %v596
        %vm932 = vcmp.eq.f32.partialorder %v931, 8.507059e+37
        %v933 = vand.u32 %v596, 2147483648
        %v934 = vor.u32 1.1754944e-38, %v933
        %v935 = vsel %vm932, %v934, %v930
        %v936 = vmul.f32 1.0, %v935
        %v937 = vrcp.pop %v597
        %v938 = vmul.f32 %v597, %v937
        %v939 = vsub.f32 1.0, %v938
        %v940 = vmul.f32 %v937, %v939
        %v941 = vadd.f32 %v937, %v940
        %vm942 = vweird.f32 %v597
        %vm943 = vweird.f32 %v937
        %vm944 = vmor %vm942, %vm943
        %v945 = vsel %vm944, %v937, %v941
        %v946 = vand.u32 2147483647, %v597
        %vm947 = vcmp.eq.f32.partialorder %v946, 8.507059e+37
        %v948 = vand.u32 %v597, 2147483648
        %v949 = vor.u32 1.1754944e-38, %v948
        %v950 = vsel %vm947, %v949, %v945
        %v951 = vmul.f32 1.0, %v950
        %v952 = vrcp.pop %v598
        %v953 = vmul.f32 %v598, %v952
        %v954 = vsub.f32 1.0, %v953
        %v955 = vmul.f32 %v952, %v954
        %v956 = vadd.f32 %v952, %v955
        %vm957 = vweird.f32 %v598
        %vm958 = vweird.f32 %v952
        %vm959 = vmor %vm957, %vm958
        %v960 = vsel %vm959, %v952, %v956
        %v961 = vand.u32 2147483647, %v598
        %vm962 = vcmp.eq.f32.partialorder %v961, 8.507059e+37
        %v963 = vand.u32 %v598, 2147483648
        %v964 = vor.u32 1.1754944e-38, %v963
        %v965 = vsel %vm962, %v964, %v960
        %v966 = vmul.f32 1.0, %v965
        %v967 = vrcp.pop %v599
        %v968 = vmul.f32 %v599, %v967
        %v969 = vsub.f32 1.0, %v968
        %v970 = vmul.f32 %v967, %v969
        %v971 = vadd.f32 %v967, %v970
        %vm972 = vweird.f32 %v599
        %vm973 = vweird.f32 %v967
        %vm974 = vmor %vm972, %vm973
        %v975 = vsel %vm974, %v967, %v971
        %v976 = vand.u32 2147483647, %v599
        %vm977 = vcmp.eq.f32.partialorder %v976, 8.507059e+37
        %v978 = vand.u32 %v599, 2147483648
        %v979 = vor.u32 1.1754944e-38, %v978
        %v980 = vsel %vm977, %v979, %v975
        %v981 = vmul.f32 1.0, %v980
        %v982 = vrcp.pop %v600
        %v983 = vmul.f32 %v600, %v982
        %v984 = vsub.f32 1.0, %v983
        %v985 = vmul.f32 %v982, %v984
        %v986 = vadd.f32 %v982, %v985
        %vm987 = vweird.f32 %v600
        %vm988 = vweird.f32 %v982
        %vm989 = vmor %vm987, %vm988
        %v990 = vsel %vm989, %v982, %v986
        %v991 = vand.u32 2147483647, %v600
        %vm992 = vcmp.eq.f32.partialorder %v991, 8.507059e+37
        %v993 = vand.u32 %v600, 2147483648
        %v994 = vor.u32 1.1754944e-38, %v993
        %v995 = vsel %vm992, %v994, %v990
        %v996 = vmul.f32 1.0, %v995
        %v997 = vrcp.pop %v601
        %v998 = vmul.f32 %v601, %v997
        %v999 = vsub.f32 1.0, %v998
        %v1000 = vmul.f32 %v997, %v999
        %v1001 = vadd.f32 %v997, %v1000
        %vm1002 = vweird.f32 %v601
        %vm1003 = vweird.f32 %v997
        %vm1004 = vmor %vm1002, %vm1003
        %v1005 = vsel %vm1004, %v997, %v1001
        %v1006 = vand.u32 2147483647, %v601
        %vm1007 = vcmp.eq.f32.partialorder %v1006, 8.507059e+37
        %v1008 = vand.u32 %v601, 2147483648
        %v1009 = vor.u32 1.1754944e-38, %v1008
        %v1010 = vsel %vm1007, %v1009, %v1005
        %v1011 = vmul.f32 1.0, %v1010
        %v1012 = vrcp.pop %v602
        %v1013 = vmul.f32 %v602, %v1012
        %v1014 = vsub.f32 1.0, %v1013
        %v1015 = vmul.f32 %v1012, %v1014
        %v1016 = vadd.f32 %v1012, %v1015
        %vm1017 = vweird.f32 %v602
        %vm1018 = vweird.f32 %v1012
        %vm1019 = vmor %vm1017, %vm1018
        %v1020 = vsel %vm1019, %v1012, %v1016
        %v1021 = vand.u32 2147483647, %v602
        %vm1022 = vcmp.eq.f32.partialorder %v1021, 8.507059e+37
        %v1023 = vand.u32 %v602, 2147483648
        %v1024 = vor.u32 1.1754944e-38, %v1023
        %v1025 = vsel %vm1022, %v1024, %v1020
        %v1026 = vmul.f32 1.0, %v1025
        %v1027 = vrcp.pop %v603
        %v1028 = vmul.f32 %v603, %v1027
        %v1029 = vsub.f32 1.0, %v1028
        %v1030 = vmul.f32 %v1027, %v1029
        %v1031 = vadd.f32 %v1027, %v1030
        %vm1032 = vweird.f32 %v603
        %vm1033 = vweird.f32 %v1027
        %vm1034 = vmor %vm1032, %vm1033
        %v1035 = vsel %vm1034, %v1027, %v1031
        %v1036 = vand.u32 2147483647, %v603
        %vm1037 = vcmp.eq.f32.partialorder %v1036, 8.507059e+37
        %v1038 = vand.u32 %v603, 2147483648
        %v1039 = vor.u32 1.1754944e-38, %v1038
        %v1040 = vsel %vm1037, %v1039, %v1035
        %v1041 = vmul.f32 1.0, %v1040
        %v1042 = vrcp.pop %v604
        %v1043 = vmul.f32 %v604, %v1042
        %v1044 = vsub.f32 1.0, %v1043
        %v1045 = vmul.f32 %v1042, %v1044
        %v1046 = vadd.f32 %v1042, %v1045
        %vm1047 = vweird.f32 %v604
        %vm1048 = vweird.f32 %v1042
        %vm1049 = vmor %vm1047, %vm1048
        %v1050 = vsel %vm1049, %v1042, %v1046
        %v1051 = vand.u32 2147483647, %v604
        %vm1052 = vcmp.eq.f32.partialorder %v1051, 8.507059e+37
        %v1053 = vand.u32 %v604, 2147483648
        %v1054 = vor.u32 1.1754944e-38, %v1053
        %v1055 = vsel %vm1052, %v1054, %v1050
        %v1056 = vmul.f32 1.0, %v1055
        %v1057 = vrcp.pop %v605
        %v1058 = vmul.f32 %v605, %v1057
        %v1059 = vsub.f32 1.0, %v1058
        %v1060 = vmul.f32 %v1057, %v1059
        %v1061 = vadd.f32 %v1057, %v1060
        %vm1062 = vweird.f32 %v605
        %vm1063 = vweird.f32 %v1057
        %vm1064 = vmor %vm1062, %vm1063
        %v1065 = vsel %vm1064, %v1057, %v1061
        %v1066 = vand.u32 2147483647, %v605
        %vm1067 = vcmp.eq.f32.partialorder %v1066, 8.507059e+37
        %v1068 = vand.u32 %v605, 2147483648
        %v1069 = vor.u32 1.1754944e-38, %v1068
        %v1070 = vsel %vm1067, %v1069, %v1065
        %v1071 = vmul.f32 1.0, %v1070
        %v1072 = vrcp.pop %v606
        %v1073 = vmul.f32 %v606, %v1072
        %v1074 = vsub.f32 1.0, %v1073
        %v1075 = vmul.f32 %v1072, %v1074
        %v1076 = vadd.f32 %v1072, %v1075
        %vm1077 = vweird.f32 %v606
        %vm1078 = vweird.f32 %v1072
        %vm1079 = vmor %vm1077, %vm1078
        %v1080 = vsel %vm1079, %v1072, %v1076
        %v1081 = vand.u32 2147483647, %v606
        %vm1082 = vcmp.eq.f32.partialorder %v1081, 8.507059e+37
        %v1083 = vand.u32 %v606, 2147483648
        %v1084 = vor.u32 1.1754944e-38, %v1083
        %v1085 = vsel %vm1082, %v1084, %v1080
        %v1086 = vmul.f32 1.0, %v1085
        %v1087 = vmul.f32 %v400, %v621
        %v1088 = vmul.f32 %v402, %v636
        %v1089 = vmul.f32 %v405, %v651
        %v1090 = vmul.f32 %v407, %v666
        %v1091 = vmul.f32 %v410, %v681
        %v1092 = vmul.f32 %v412, %v696
        %v1093 = vmul.f32 %v415, %v711
        %v1094 = vmul.f32 %v417, %v726
        %v1095 = vmul.f32 %v420, %v741
        %v1096 = vmul.f32 %v422, %v756
        %v1097 = vmul.f32 %v425, %v771
        %v1098 = vmul.f32 %v427, %v786
        %v1099 = vmul.f32 %v430, %v801
        %v1100 = vmul.f32 %v432, %v816
        %v1101 = vmul.f32 %v435, %v831
        %v1102 = vmul.f32 %v437, %v846
        %v1103 = vmul.f32 %v440, %v861
        %v1104 = vmul.f32 %v442, %v876
        %v1105 = vmul.f32 %v445, %v891
        %v1106 = vmul.f32 %v447, %v906
        %v1107 = vmul.f32 %v450, %v921
        %v1108 = vmul.f32 %v452, %v936
        %v1109 = vmul.f32 %v455, %v951
        %v1110 = vmul.f32 %v457, %v966
        %v1111 = vmul.f32 %v460, %v981
        %v1112 = vmul.f32 %v462, %v996
        %v1113 = vmul.f32 %v465, %v1011
        %v1114 = vmul.f32 %v467, %v1026
        %v1115 = vmul.f32 %v470, %v1041
        %v1116 = vmul.f32 %v472, %v1056
        %v1117 = vmul.f32 %v475, %v1071
        %v1118 = vmul.f32 %v477, %v1086
        %1119 = vst [vmem:[%s188] sm:$0xff] %v1087
        %1120 = vst [vmem:[%s188 + $0x8] sm:$0xff] %v1088
        %1121 = vst [vmem:[%s188 + $0x10] sm:$0xff] %v1089
        %1122 = vst [vmem:[%s188 + $0x18] sm:$0xff] %v1090
        %1123 = vst [vmem:[%s188 + $0x20] sm:$0xff] %v1091
        %1124 = vst [vmem:[%s188 + $0x28] sm:$0xff] %v1092
        %1125 = vst [vmem:[%s188 + $0x30] sm:$0xff] %v1093
        %1126 = vst [vmem:[%s188 + $0x38] sm:$0xff] %v1094
        %1127 = vst [vmem:[%s188 + $0x40] sm:$0xff] %v1095
        %1128 = vst [vmem:[%s188 + $0x48] sm:$0xff] %v1096
        %1129 = vst [vmem:[%s188 + $0x50] sm:$0xff] %v1097
        %1130 = vst [vmem:[%s188 + $0x58] sm:$0xff] %v1098
        %1131 = vst [vmem:[%s188 + $0x60] sm:$0xff] %v1099
        %1132 = vst [vmem:[%s188 + $0x68] sm:$0xff] %v1100
        %1133 = vst [vmem:[%s188 + $0x70] sm:$0xff] %v1101
        %1134 = vst [vmem:[%s188 + $0x78] sm:$0xff] %v1102
        %1135 = vst [vmem:[%s188 + $0x80] sm:$0xff] %v1103
        %1136 = vst [vmem:[%s188 + $0x88] sm:$0xff] %v1104
        %1137 = vst [vmem:[%s188 + $0x90] sm:$0xff] %v1105
        %1138 = vst [vmem:[%s188 + $0x98] sm:$0xff] %v1106
        %1139 = vst [vmem:[%s188 + $0xa0] sm:$0xff] %v1107
        %1140 = vst [vmem:[%s188 + $0xa8] sm:$0xff] %v1108
        %1141 = vst [vmem:[%s188 + $0xb0] sm:$0xff] %v1109
        %1142 = vst [vmem:[%s188 + $0xb8] sm:$0xff] %v1110
        %1143 = vst [vmem:[%s188 + $0xc0] sm:$0xff] %v1111
        %1144 = vst [vmem:[%s188 + $0xc8] sm:$0xff] %v1112
        %1145 = vst [vmem:[%s188 + $0xd0] sm:$0xff] %v1113
        %1146 = vst [vmem:[%s188 + $0xd8] sm:$0xff] %v1114
        %1147 = vst [vmem:[%s188 + $0xe0] sm:$0xff] %v1115
        %1148 = vst [vmem:[%s188 + $0xe8] sm:$0xff] %v1116
        %1149 = vst [vmem:[%s188 + $0xf0] sm:$0xff] %v1117
        %1150 = vst [vmem:[%s188 + $0xf8] sm:$0xff] %v1118
        %s1151 = sand.u32 %s109, 1
        %s1152 = scalar_lea.sflag [#allocation3], %s1151
        %s1153 = sand.u32 %s109, 1
        %s1154 = smul.addr %s1153, 256
        %s1155 = scalar_lea.vmem [#allocation2], %s1154
        // Predicated region
        $region33: #{tpu_custom_call.1} parent=31 // pred_check
          %p1156 = pneg %p119
        $region34: #{tpu_custom_call.1} parent=31 // pred_check_branch
          %1158 = sbr.rel (%p1156) target = $region36
        $region35: #{tpu_custom_call.1} parent=31 // pred_region
          %s1159 = smul.u32 32, %s22
          %1161 = vsyncadd %s1152, 0
          %s1162 = smul.addr %s21, 32
          %s1163 = sadd.s32 %s1159, %s1162
          %s1164 = smul.addr %s1163, 8
          %s1165 = scalar_lea.hbm %s3, %s1164
          %s1166 = sshll.u32 %s1155, 4
          %s1167 = int_to_ptr.vmem [resolvable:$true] %s1166
          %s1168 = sshll.u32 %s1165, 4
          %s1169 = int_to_ptr.hbm [resolvable:$true] %s1168
          %1174 = dma.vmem_to_hbm [thread:$0]  %s1167, 4096, %s1169, %s1152, 128, 128, 8
        $region36: #{tpu_custom_call.1} parent=31 // pred_fallthru
          _
      $region32: #{tpu_custom_call.1} parent=5 // pred_fallthru
        _
      %p1175 = scmp.le.s32.totalorder 2, %s12
      // Predicated region
      $region37: #{tpu_custom_call.1} parent=5 // pred_check
        %p1176 = pneg %p1175
      $region38: #{tpu_custom_call.1} parent=5 // pred_check_branch
        %1178 = sbr.rel (%p1176) target = $region40
      $region39: #{tpu_custom_call.1} parent=5 // pred_region
        %s1179 = ssub.s32 %s12, 2
        // Predicated region
        $region41: #{tpu_custom_call.1} parent=39 // pred_check
          %p1180 = pneg %p125
        $region42: #{tpu_custom_call.1} parent=39 // pred_check_branch
          %1182 = sbr.rel (%p1180) target = $region44
        $region43: #{tpu_custom_call.1} parent=39 // pred_region
          %s1183 = sand.u32 %s110, 1
          %s1184 = scalar_lea.sflag [#allocation3], %s1183
          %s1185 = sand.u32 %s110, 1
          %s1186 = smul.addr %s1185, 256
          %s1187 = scalar_lea.vmem [#allocation2], %s1186
          %1189 = dma.done %s1184, 4096
        $region44: #{tpu_custom_call.1} parent=39 // pred_fallthru
          _
      $region40: #{tpu_custom_call.1} parent=5 // pred_fallthru
        _
    $region6: #{tpu_custom_call.1} parent=1 // loop_footer
      %s16 = sadd.s32 1, %s12
    $region7: #{tpu_custom_call.1} parent=1 // loop_footer_branch
      %11 = sbr.rel target = $region3
    $region8: #{tpu_custom_call.1} parent=1 // loop_exit
      _
    %1190 = vsyncpa [#allocation3], 1
    %s1191 = scalar_lea.sflag [#allocation3], 1
    %1192 = vsyncpa %s1191, 1

</llo_original>
